<compile_context>
chip_gen: v5e
topology: v5e:2x2
jax: 0.10.0
libtpu: 0.0.40
codegen_flags: <defaults>
</compile_context>

<pallas_src>
import jax
import jax.numpy as jnp
from jax.experimental import pallas as pl
from jax.experimental.pallas import tpu as pltpu


def lstm_kernel(gx_ref, whh_ref, h0_ref, c0_ref, h_out_ref):
    """Serial LSTM recurrence over the whole sequence in one invocation.

    gx_ref : (S, B, 4H)  precomputed x_t @ W_ih^T + bias, gate order [i,f,o,g]
    whh_ref: (H, 4H)     recurrent weights (transposed, columns reordered)
    h0_ref, c0_ref: (B, H) initial state
    h_out_ref: (B, H)    last hidden state
    """
    S = gx_ref.shape[0]
    H = h0_ref.shape[-1]

    whh = whh_ref[...]            # resident in vregs across the loop

    def step(t, carry):
        h, c = carry
        gates = gx_ref[t] + jnp.dot(h, whh,
                                    preferred_element_type=jnp.float32)
        # Gate order [i, f, o, g]: one contiguous sigmoid slab + one tanh slab.
        sig = jax.nn.sigmoid(gates[:, :3 * H])
        g = jnp.tanh(gates[:, 3 * H:])
        i = sig[:, :H]
        f = sig[:, H:2 * H]
        o = sig[:, 2 * H:3 * H]
        c_new = f * c + i * g
        h_new = o * jnp.tanh(c_new)
        return h_new, c_new

    h_last, _ = jax.lax.fori_loop(0, S, step,
                                  (h0_ref[...], c0_ref[...]),
                                  unroll=True)
    h_out_ref[...] = h_last


def lstm_forward(x_tokens, params, h0, c0):
    # ---- glue (plain JAX / XLA): embedding gather ----
    emb = jnp.take(params["embedding"], x_tokens, axis=0)       # (B, S, E)
    B, S, E = emb.shape
    H = h0.shape[-1]

    # Pad batch to the f32 sublane count (8).
    B_pad = max(8, ((B + 7) // 8) * 8)
    pad = B_pad - B

    x_sbe = jnp.transpose(emb, (1, 0, 2)).astype(jnp.float32)   # (S, B, E)
    if pad:
        x_sbe = jnp.pad(x_sbe, ((0, 0), (0, pad), (0, 0)))
        h0_p = jnp.pad(h0, ((0, pad), (0, 0)))
        c0_p = jnp.pad(c0, ((0, pad), (0, 0)))
    else:
        h0_p, c0_p = h0, c0

    # Reorder gates from PyTorch [i, f, g, o] to [i, f, o, g] by permuting
    # weight columns / bias entries, so the kernel applies sigmoid to one
    # contiguous 3H slab and tanh to the trailing H slab.
    def reorder_cols(w_t):                                       # (.., 4H)
        i, f, g, o = jnp.split(w_t, 4, axis=-1)
        return jnp.concatenate([i, f, o, g], axis=-1)

    wih_t = reorder_cols(params["w_ih"].T)                       # (E, 4H)
    whh_t = reorder_cols(params["w_hh"].T)                       # (H, 4H)
    bias = reorder_cols((params["b_ih"] + params["b_hh"]).reshape(1, 4 * H))

    # Hoisted input projection: ONE batched matmul over all S*B_pad rows
    # (outside the serial critical path), bias folded in.
    gx = jnp.einsum("sbe,ef->sbf", x_sbe, wih_t) + bias          # (S, B_pad, 4H)

    vmem = pl.BlockSpec(memory_space=pltpu.MemorySpace.VMEM)
    h_last = pl.pallas_call(
        lstm_kernel,
        out_shape=jax.ShapeDtypeStruct((B_pad, H), jnp.float32),
        in_specs=[vmem, vmem, vmem, vmem],
        out_specs=vmem,
    )(gx, whh_t, h0_p, c0_p)

    # ---- glue (plain JAX): final Linear on last hidden state (O=1 is
    # lane-sparse, kept out of the kernel per the perf review) ----
    h_last = h_last[:B]
    return h_last @ params["w_out"].T + params["b_out"]


def reference_forward(x_tokens, params, h0, c0):
    """Pure-JAX reference (lax.scan) mirroring torch.nn.LSTM semantics."""
    emb = jnp.take(params["embedding"], x_tokens, axis=0)        # (B, S, E)
    H = h0.shape[-1]

    def step(carry, x_t):
        h, c = carry
        gates = (x_t @ params["w_ih"].T + h @ params["w_hh"].T
                 + params["b_ih"] + params["b_hh"])
        i = jax.nn.sigmoid(gates[:, 0:H])
        f = jax.nn.sigmoid(gates[:, H:2 * H])
        g = jnp.tanh(gates[:, 2 * H:3 * H])
        o = jax.nn.sigmoid(gates[:, 3 * H:4 * H])
        c_new = f * c + i * g
        h_new = o * jnp.tanh(c_new)
        return (h_new, c_new), h_new

    (h_last, _), _ = jax.lax.scan(step, (h0, c0),
                                  jnp.transpose(emb, (1, 0, 2)))
    return h_last @ params["w_out"].T + params["b_out"]


def init_params(key, vocab_size, input_size, hidden_size, output_size):
    ks = jax.random.split(key, 7)
    bound = 1.0 / jnp.sqrt(hidden_size)
    out_bound = 1.0 / jnp.sqrt(hidden_size)
    return {
        "embedding": jax.random.normal(ks[0], (vocab_size, input_size),
                                       jnp.float32),
        "w_ih": jax.random.uniform(ks[1], (4 * hidden_size, input_size),
                                   jnp.float32, -bound, bound),
        "w_hh": jax.random.uniform(ks[2], (4 * hidden_size, hidden_size),
                                   jnp.float32, -bound, bound),
        "b_ih": jax.random.uniform(ks[3], (4 * hidden_size,),
                                   jnp.float32, -bound, bound),
        "b_hh": jax.random.uniform(ks[4], (4 * hidden_size,),
                                   jnp.float32, -bound, bound),
        "w_out": jax.random.uniform(ks[5], (output_size, hidden_size),
                                    jnp.float32, -out_bound, out_bound),
        "b_out": jax.random.uniform(ks[6], (output_size,),
                                    jnp.float32, -out_bound, out_bound),
    }


if __name__ == "__main__":
    vocab_size, input_size, hidden_size, output_size = 50, 16, 32, 1
    batch, seq = 2, 8

    key = jax.random.PRNGKey(0)
    k_param, k_tok, k_h, k_c = jax.random.split(key, 4)

    params = init_params(k_param, vocab_size, input_size, hidden_size,
                         output_size)
    x_tokens = jax.random.randint(k_tok, (batch, seq), 0, vocab_size,
                                  dtype=jnp.int32)
    h0 = jax.random.normal(k_h, (batch, hidden_size), jnp.float32)
    c0 = jax.random.normal(k_c, (batch, hidden_size), jnp.float32)

    out = jax.block_until_ready(lstm_forward(x_tokens, params, h0, c0))
    ref = jax.block_until_ready(reference_forward(x_tokens, params, h0, c0))

    assert out.shape == (batch, output_size)
    assert jnp.allclose(out, ref, rtol=1e-3, atol=1e-3), (out, ref)

    print("KERNEL_OK")
</pallas_src>

<mosaic_0001>
module attributes {stable_mosaic.version = 11 : i64} {
  func.func @lstm_kernel(%arg0: memref<8x8x128xf32, #tpu.memory_space<vmem>>, %arg1: memref<32x128xf32, #tpu.memory_space<vmem>>, %arg2: memref<8x32xf32, #tpu.memory_space<vmem>>, %arg3: memref<8x32xf32, #tpu.memory_space<vmem>>, %arg4: memref<8x32xf32, #tpu.memory_space<vmem>>) attributes {dimension_semantics = [], scalar_prefetch = 0 : i64, scratch_operands = 0 : i64, tpu.core_type = #tpu.core_type<tc>} {
    %c0 = arith.constant 0 : index
    %c0_0 = arith.constant 0 : index
    %0 = vector.load %arg1[%c0, %c0_0] : memref<32x128xf32, #tpu.memory_space<vmem>>, vector<32x128xf32>
    %c0_1 = arith.constant 0 : index
    %c0_2 = arith.constant 0 : index
    %1 = vector.load %arg2[%c0_1, %c0_2] : memref<8x32xf32, #tpu.memory_space<vmem>>, vector<8x32xf32>
    %c0_3 = arith.constant 0 : index
    %c0_4 = arith.constant 0 : index
    %2 = vector.load %arg3[%c0_3, %c0_4] : memref<8x32xf32, #tpu.memory_space<vmem>>, vector<8x32xf32>
    %c0_i32 = arith.constant 0 : i32
    %3 = arith.index_cast %c0_i32 : i32 to index
    %c0_5 = arith.constant 0 : index
    %c0_6 = arith.constant 0 : index
    %4 = vector.load %arg0[%3, %c0_5, %c0_6] : memref<8x8x128xf32, #tpu.memory_space<vmem>>, vector<1x8x128xf32>
    %5 = vector.shape_cast %4 : vector<1x8x128xf32> to vector<8x128xf32>
    %cst = arith.constant dense<0.000000e+00> : vector<8x128xf32>
    %6 = tpu.matmul %1, %0, %cst {dimension_numbers = #tpu.dot_dimension_numbers<[1], [0], [0], [1], [0, 0, 1, 1], [], []>} : vector<8x32xf32>, vector<32x128xf32>, vector<8x128xf32> -> vector<8x128xf32>
    %7 = arith.addf %5, %6 : vector<8x128xf32>
    %8 = vector.extract_strided_slice %7 {offsets = [0, 0], sizes = [8, 96], strides = [1, 1]} : vector<8x128xf32> to vector<8x96xf32>
    %9 = arith.negf %8 : vector<8x96xf32>
    %10 = math.exp %9 : vector<8x96xf32>
    %cst_7 = arith.constant 1.000000e+00 : f32
    %11 = vector.broadcast %cst_7 : f32 to vector<8x96xf32>
    %12 = arith.addf %11, %10 : vector<8x96xf32>
    %13 = arith.divf %11, %12 : vector<8x96xf32>
    %14 = vector.extract_strided_slice %7 {offsets = [0, 96], sizes = [8, 32], strides = [1, 1]} : vector<8x128xf32> to vector<8x32xf32>
    %15 = math.tanh %14 : vector<8x32xf32>
    %16 = vector.extract_strided_slice %13 {offsets = [0, 0], sizes = [8, 32], strides = [1, 1]} : vector<8x96xf32> to vector<8x32xf32>
    %17 = vector.extract_strided_slice %13 {offsets = [0, 32], sizes = [8, 32], strides = [1, 1]} : vector<8x96xf32> to vector<8x32xf32>
    %18 = vector.extract_strided_slice %13 {offsets = [0, 64], sizes = [8, 32], strides = [1, 1]} : vector<8x96xf32> to vector<8x32xf32>
    %19 = arith.mulf %17, %2 : vector<8x32xf32>
    %20 = arith.mulf %16, %15 : vector<8x32xf32>
    %21 = arith.addf %19, %20 : vector<8x32xf32>
    %22 = math.tanh %21 : vector<8x32xf32>
    %23 = arith.mulf %18, %22 : vector<8x32xf32>
    %c1_i32 = arith.constant 1 : i32
    %24 = arith.index_cast %c1_i32 : i32 to index
    %c0_8 = arith.constant 0 : index
    %c0_9 = arith.constant 0 : index
    %25 = vector.load %arg0[%24, %c0_8, %c0_9] : memref<8x8x128xf32, #tpu.memory_space<vmem>>, vector<1x8x128xf32>
    %26 = vector.shape_cast %25 : vector<1x8x128xf32> to vector<8x128xf32>
    %cst_10 = arith.constant dense<0.000000e+00> : vector<8x128xf32>
    %27 = tpu.matmul %23, %0, %cst_10 {dimension_numbers = #tpu.dot_dimension_numbers<[1], [0], [0], [1], [0, 0, 1, 1], [], []>} : vector<8x32xf32>, vector<32x128xf32>, vector<8x128xf32> -> vector<8x128xf32>
    %28 = arith.addf %26, %27 : vector<8x128xf32>
    %29 = vector.extract_strided_slice %28 {offsets = [0, 0], sizes = [8, 96], strides = [1, 1]} : vector<8x128xf32> to vector<8x96xf32>
    %30 = arith.negf %29 : vector<8x96xf32>
    %31 = math.exp %30 : vector<8x96xf32>
    %cst_11 = arith.constant 1.000000e+00 : f32
    %32 = vector.broadcast %cst_11 : f32 to vector<8x96xf32>
    %33 = arith.addf %32, %31 : vector<8x96xf32>
    %34 = arith.divf %32, %33 : vector<8x96xf32>
    %35 = vector.extract_strided_slice %28 {offsets = [0, 96], sizes = [8, 32], strides = [1, 1]} : vector<8x128xf32> to vector<8x32xf32>
    %36 = math.tanh %35 : vector<8x32xf32>
    %37 = vector.extract_strided_slice %34 {offsets = [0, 0], sizes = [8, 32], strides = [1, 1]} : vector<8x96xf32> to vector<8x32xf32>
    %38 = vector.extract_strided_slice %34 {offsets = [0, 32], sizes = [8, 32], strides = [1, 1]} : vector<8x96xf32> to vector<8x32xf32>
    %39 = vector.extract_strided_slice %34 {offsets = [0, 64], sizes = [8, 32], strides = [1, 1]} : vector<8x96xf32> to vector<8x32xf32>
    %40 = arith.mulf %38, %21 : vector<8x32xf32>
    %41 = arith.mulf %37, %36 : vector<8x32xf32>
    %42 = arith.addf %40, %41 : vector<8x32xf32>
    %43 = math.tanh %42 : vector<8x32xf32>
    %44 = arith.mulf %39, %43 : vector<8x32xf32>
    %c2_i32 = arith.constant 2 : i32
    %45 = arith.index_cast %c2_i32 : i32 to index
    %c0_12 = arith.constant 0 : index
    %c0_13 = arith.constant 0 : index
    %46 = vector.load %arg0[%45, %c0_12, %c0_13] : memref<8x8x128xf32, #tpu.memory_space<vmem>>, vector<1x8x128xf32>
    %47 = vector.shape_cast %46 : vector<1x8x128xf32> to vector<8x128xf32>
    %cst_14 = arith.constant dense<0.000000e+00> : vector<8x128xf32>
    %48 = tpu.matmul %44, %0, %cst_14 {dimension_numbers = #tpu.dot_dimension_numbers<[1], [0], [0], [1], [0, 0, 1, 1], [], []>} : vector<8x32xf32>, vector<32x128xf32>, vector<8x128xf32> -> vector<8x128xf32>
    %49 = arith.addf %47, %48 : vector<8x128xf32>
    %50 = vector.extract_strided_slice %49 {offsets = [0, 0], sizes = [8, 96], strides = [1, 1]} : vector<8x128xf32> to vector<8x96xf32>
    %51 = arith.negf %50 : vector<8x96xf32>
    %52 = math.exp %51 : vector<8x96xf32>
    %cst_15 = arith.constant 1.000000e+00 : f32
    %53 = vector.broadcast %cst_15 : f32 to vector<8x96xf32>
    %54 = arith.addf %53, %52 : vector<8x96xf32>
    %55 = arith.divf %53, %54 : vector<8x96xf32>
    %56 = vector.extract_strided_slice %49 {offsets = [0, 96], sizes = [8, 32], strides = [1, 1]} : vector<8x128xf32> to vector<8x32xf32>
    %57 = math.tanh %56 : vector<8x32xf32>
    %58 = vector.extract_strided_slice %55 {offsets = [0, 0], sizes = [8, 32], strides = [1, 1]} : vector<8x96xf32> to vector<8x32xf32>
    %59 = vector.extract_strided_slice %55 {offsets = [0, 32], sizes = [8, 32], strides = [1, 1]} : vector<8x96xf32> to vector<8x32xf32>
    %60 = vector.extract_strided_slice %55 {offsets = [0, 64], sizes = [8, 32], strides = [1, 1]} : vector<8x96xf32> to vector<8x32xf32>
    %61 = arith.mulf %59, %42 : vector<8x32xf32>
    %62 = arith.mulf %58, %57 : vector<8x32xf32>
    %63 = arith.addf %61, %62 : vector<8x32xf32>
    %64 = math.tanh %63 : vector<8x32xf32>
    %65 = arith.mulf %60, %64 : vector<8x32xf32>
    %c3_i32 = arith.constant 3 : i32
    %66 = arith.index_cast %c3_i32 : i32 to index
    %c0_16 = arith.constant 0 : index
    %c0_17 = arith.constant 0 : index
    %67 = vector.load %arg0[%66, %c0_16, %c0_17] : memref<8x8x128xf32, #tpu.memory_space<vmem>>, vector<1x8x128xf32>
    %68 = vector.shape_cast %67 : vector<1x8x128xf32> to vector<8x128xf32>
    %cst_18 = arith.constant dense<0.000000e+00> : vector<8x128xf32>
    %69 = tpu.matmul %65, %0, %cst_18 {dimension_numbers = #tpu.dot_dimension_numbers<[1], [0], [0], [1], [0, 0, 1, 1], [], []>} : vector<8x32xf32>, vector<32x128xf32>, vector<8x128xf32> -> vector<8x128xf32>
    %70 = arith.addf %68, %69 : vector<8x128xf32>
    %71 = vector.extract_strided_slice %70 {offsets = [0, 0], sizes = [8, 96], strides = [1, 1]} : vector<8x128xf32> to vector<8x96xf32>
    %72 = arith.negf %71 : vector<8x96xf32>
    %73 = math.exp %72 : vector<8x96xf32>
    %cst_19 = arith.constant 1.000000e+00 : f32
    %74 = vector.broadcast %cst_19 : f32 to vector<8x96xf32>
    %75 = arith.addf %74, %73 : vector<8x96xf32>
    %76 = arith.divf %74, %75 : vector<8x96xf32>
    %77 = vector.extract_strided_slice %70 {offsets = [0, 96], sizes = [8, 32], strides = [1, 1]} : vector<8x128xf32> to vector<8x32xf32>
    %78 = math.tanh %77 : vector<8x32xf32>
    %79 = vector.extract_strided_slice %76 {offsets = [0, 0], sizes = [8, 32], strides = [1, 1]} : vector<8x96xf32> to vector<8x32xf32>
    %80 = vector.extract_strided_slice %76 {offsets = [0, 32], sizes = [8, 32], strides = [1, 1]} : vector<8x96xf32> to vector<8x32xf32>
    %81 = vector.extract_strided_slice %76 {offsets = [0, 64], sizes = [8, 32], strides = [1, 1]} : vector<8x96xf32> to vector<8x32xf32>
    %82 = arith.mulf %80, %63 : vector<8x32xf32>
    %83 = arith.mulf %79, %78 : vector<8x32xf32>
    %84 = arith.addf %82, %83 : vector<8x32xf32>
    %85 = math.tanh %84 : vector<8x32xf32>
    %86 = arith.mulf %81, %85 : vector<8x32xf32>
    %c4_i32 = arith.constant 4 : i32
    %87 = arith.index_cast %c4_i32 : i32 to index
    %c0_20 = arith.constant 0 : index
    %c0_21 = arith.constant 0 : index
    %88 = vector.load %arg0[%87, %c0_20, %c0_21] : memref<8x8x128xf32, #tpu.memory_space<vmem>>, vector<1x8x128xf32>
    %89 = vector.shape_cast %88 : vector<1x8x128xf32> to vector<8x128xf32>
    %cst_22 = arith.constant dense<0.000000e+00> : vector<8x128xf32>
    %90 = tpu.matmul %86, %0, %cst_22 {dimension_numbers = #tpu.dot_dimension_numbers<[1], [0], [0], [1], [0, 0, 1, 1], [], []>} : vector<8x32xf32>, vector<32x128xf32>, vector<8x128xf32> -> vector<8x128xf32>
    %91 = arith.addf %89, %90 : vector<8x128xf32>
    %92 = vector.extract_strided_slice %91 {offsets = [0, 0], sizes = [8, 96], strides = [1, 1]} : vector<8x128xf32> to vector<8x96xf32>
    %93 = arith.negf %92 : vector<8x96xf32>
    %94 = math.exp %93 : vector<8x96xf32>
    %cst_23 = arith.constant 1.000000e+00 : f32
    %95 = vector.broadcast %cst_23 : f32 to vector<8x96xf32>
    %96 = arith.addf %95, %94 : vector<8x96xf32>
    %97 = arith.divf %95, %96 : vector<8x96xf32>
    %98 = vector.extract_strided_slice %91 {offsets = [0, 96], sizes = [8, 32], strides = [1, 1]} : vector<8x128xf32> to vector<8x32xf32>
    %99 = math.tanh %98 : vector<8x32xf32>
    %100 = vector.extract_strided_slice %97 {offsets = [0, 0], sizes = [8, 32], strides = [1, 1]} : vector<8x96xf32> to vector<8x32xf32>
    %101 = vector.extract_strided_slice %97 {offsets = [0, 32], sizes = [8, 32], strides = [1, 1]} : vector<8x96xf32> to vector<8x32xf32>
    %102 = vector.extract_strided_slice %97 {offsets = [0, 64], sizes = [8, 32], strides = [1, 1]} : vector<8x96xf32> to vector<8x32xf32>
    %103 = arith.mulf %101, %84 : vector<8x32xf32>
    %104 = arith.mulf %100, %99 : vector<8x32xf32>
    %105 = arith.addf %103, %104 : vector<8x32xf32>
    %106 = math.tanh %105 : vector<8x32xf32>
    %107 = arith.mulf %102, %106 : vector<8x32xf32>
    %c5_i32 = arith.constant 5 : i32
    %108 = arith.index_cast %c5_i32 : i32 to index
    %c0_24 = arith.constant 0 : index
    %c0_25 = arith.constant 0 : index
    %109 = vector.load %arg0[%108, %c0_24, %c0_25] : memref<8x8x128xf32, #tpu.memory_space<vmem>>, vector<1x8x128xf32>
    %110 = vector.shape_cast %109 : vector<1x8x128xf32> to vector<8x128xf32>
    %cst_26 = arith.constant dense<0.000000e+00> : vector<8x128xf32>
    %111 = tpu.matmul %107, %0, %cst_26 {dimension_numbers = #tpu.dot_dimension_numbers<[1], [0], [0], [1], [0, 0, 1, 1], [], []>} : vector<8x32xf32>, vector<32x128xf32>, vector<8x128xf32> -> vector<8x128xf32>
    %112 = arith.addf %110, %111 : vector<8x128xf32>
    %113 = vector.extract_strided_slice %112 {offsets = [0, 0], sizes = [8, 96], strides = [1, 1]} : vector<8x128xf32> to vector<8x96xf32>
    %114 = arith.negf %113 : vector<8x96xf32>
    %115 = math.exp %114 : vector<8x96xf32>
    %cst_27 = arith.constant 1.000000e+00 : f32
    %116 = vector.broadcast %cst_27 : f32 to vector<8x96xf32>
    %117 = arith.addf %116, %115 : vector<8x96xf32>
    %118 = arith.divf %116, %117 : vector<8x96xf32>
    %119 = vector.extract_strided_slice %112 {offsets = [0, 96], sizes = [8, 32], strides = [1, 1]} : vector<8x128xf32> to vector<8x32xf32>
    %120 = math.tanh %119 : vector<8x32xf32>
    %121 = vector.extract_strided_slice %118 {offsets = [0, 0], sizes = [8, 32], strides = [1, 1]} : vector<8x96xf32> to vector<8x32xf32>
    %122 = vector.extract_strided_slice %118 {offsets = [0, 32], sizes = [8, 32], strides = [1, 1]} : vector<8x96xf32> to vector<8x32xf32>
    %123 = vector.extract_strided_slice %118 {offsets = [0, 64], sizes = [8, 32], strides = [1, 1]} : vector<8x96xf32> to vector<8x32xf32>
    %124 = arith.mulf %122, %105 : vector<8x32xf32>
    %125 = arith.mulf %121, %120 : vector<8x32xf32>
    %126 = arith.addf %124, %125 : vector<8x32xf32>
    %127 = math.tanh %126 : vector<8x32xf32>
    %128 = arith.mulf %123, %127 : vector<8x32xf32>
    %c6_i32 = arith.constant 6 : i32
    %129 = arith.index_cast %c6_i32 : i32 to index
    %c0_28 = arith.constant 0 : index
    %c0_29 = arith.constant 0 : index
    %130 = vector.load %arg0[%129, %c0_28, %c0_29] : memref<8x8x128xf32, #tpu.memory_space<vmem>>, vector<1x8x128xf32>
    %131 = vector.shape_cast %130 : vector<1x8x128xf32> to vector<8x128xf32>
    %cst_30 = arith.constant dense<0.000000e+00> : vector<8x128xf32>
    %132 = tpu.matmul %128, %0, %cst_30 {dimension_numbers = #tpu.dot_dimension_numbers<[1], [0], [0], [1], [0, 0, 1, 1], [], []>} : vector<8x32xf32>, vector<32x128xf32>, vector<8x128xf32> -> vector<8x128xf32>
    %133 = arith.addf %131, %132 : vector<8x128xf32>
    %134 = vector.extract_strided_slice %133 {offsets = [0, 0], sizes = [8, 96], strides = [1, 1]} : vector<8x128xf32> to vector<8x96xf32>
    %135 = arith.negf %134 : vector<8x96xf32>
    %136 = math.exp %135 : vector<8x96xf32>
    %cst_31 = arith.constant 1.000000e+00 : f32
    %137 = vector.broadcast %cst_31 : f32 to vector<8x96xf32>
    %138 = arith.addf %137, %136 : vector<8x96xf32>
    %139 = arith.divf %137, %138 : vector<8x96xf32>
    %140 = vector.extract_strided_slice %133 {offsets = [0, 96], sizes = [8, 32], strides = [1, 1]} : vector<8x128xf32> to vector<8x32xf32>
    %141 = math.tanh %140 : vector<8x32xf32>
    %142 = vector.extract_strided_slice %139 {offsets = [0, 0], sizes = [8, 32], strides = [1, 1]} : vector<8x96xf32> to vector<8x32xf32>
    %143 = vector.extract_strided_slice %139 {offsets = [0, 32], sizes = [8, 32], strides = [1, 1]} : vector<8x96xf32> to vector<8x32xf32>
    %144 = vector.extract_strided_slice %139 {offsets = [0, 64], sizes = [8, 32], strides = [1, 1]} : vector<8x96xf32> to vector<8x32xf32>
    %145 = arith.mulf %143, %126 : vector<8x32xf32>
    %146 = arith.mulf %142, %141 : vector<8x32xf32>
    %147 = arith.addf %145, %146 : vector<8x32xf32>
    %148 = math.tanh %147 : vector<8x32xf32>
    %149 = arith.mulf %144, %148 : vector<8x32xf32>
    %c7_i32 = arith.constant 7 : i32
    %150 = arith.index_cast %c7_i32 : i32 to index
    %c0_32 = arith.constant 0 : index
    %c0_33 = arith.constant 0 : index
    %151 = vector.load %arg0[%150, %c0_32, %c0_33] : memref<8x8x128xf32, #tpu.memory_space<vmem>>, vector<1x8x128xf32>
    %152 = vector.shape_cast %151 : vector<1x8x128xf32> to vector<8x128xf32>
    %cst_34 = arith.constant dense<0.000000e+00> : vector<8x128xf32>
    %153 = tpu.matmul %149, %0, %cst_34 {dimension_numbers = #tpu.dot_dimension_numbers<[1], [0], [0], [1], [0, 0, 1, 1], [], []>} : vector<8x32xf32>, vector<32x128xf32>, vector<8x128xf32> -> vector<8x128xf32>
    %154 = arith.addf %152, %153 : vector<8x128xf32>
    %155 = vector.extract_strided_slice %154 {offsets = [0, 0], sizes = [8, 96], strides = [1, 1]} : vector<8x128xf32> to vector<8x96xf32>
    %156 = arith.negf %155 : vector<8x96xf32>
    %157 = math.exp %156 : vector<8x96xf32>
    %cst_35 = arith.constant 1.000000e+00 : f32
    %158 = vector.broadcast %cst_35 : f32 to vector<8x96xf32>
    %159 = arith.addf %158, %157 : vector<8x96xf32>
    %160 = arith.divf %158, %159 : vector<8x96xf32>
    %161 = vector.extract_strided_slice %154 {offsets = [0, 96], sizes = [8, 32], strides = [1, 1]} : vector<8x128xf32> to vector<8x32xf32>
    %162 = math.tanh %161 : vector<8x32xf32>
    %163 = vector.extract_strided_slice %160 {offsets = [0, 0], sizes = [8, 32], strides = [1, 1]} : vector<8x96xf32> to vector<8x32xf32>
    %164 = vector.extract_strided_slice %160 {offsets = [0, 32], sizes = [8, 32], strides = [1, 1]} : vector<8x96xf32> to vector<8x32xf32>
    %165 = vector.extract_strided_slice %160 {offsets = [0, 64], sizes = [8, 32], strides = [1, 1]} : vector<8x96xf32> to vector<8x32xf32>
    %166 = arith.mulf %164, %147 : vector<8x32xf32>
    %167 = arith.mulf %163, %162 : vector<8x32xf32>
    %168 = arith.addf %166, %167 : vector<8x32xf32>
    %169 = math.tanh %168 : vector<8x32xf32>
    %170 = arith.mulf %165, %169 : vector<8x32xf32>
    %c8_i32 = arith.constant 8 : i32
    %c0_36 = arith.constant 0 : index
    %c0_37 = arith.constant 0 : index
    %171 = vector.load %arg4[%c0_36, %c0_37] : memref<8x32xf32, #tpu.memory_space<vmem>>, vector<8x32xf32>
    tpu.vector_store %arg4[%c0_36, %c0_37], %170 {strides = array<i32>} : memref<8x32xf32, #tpu.memory_space<vmem>>, vector<8x32xf32>,
    return
  }
}

</mosaic_0001>

<llo_original>
// kernel: tpu_custom_call.1
$region0: #{tpu_custom_call.1}
  #allocation0 [shape = 'u32[]', space=smem, size = 0x4, offset = 0x4, fixed_abs, tag = 'smem constant byte address 0x4 - core index']
  #allocation1 [shape = 'u32[72,128]{1,0:T(1,128)}', space=vmem, size = 0x9000, scoped, tag = 'internal scratch']
  %s0 = inlined_call_operand.hbm [shape: f32[8,8,128], index: 0, kind: input, shape index: {}]
  %s1 = inlined_call_operand.hbm [shape: f32[32,128], index: 1, kind: input, shape index: {}]
  %s2 = inlined_call_operand.hbm [shape: f32[8,32], index: 2, kind: input, shape index: {}]
  %s3 = inlined_call_operand.hbm [shape: f32[8,32], index: 3, kind: input, shape index: {}]
  %s4 = inlined_call_operand.hbm [shape: f32[8,32], index: 4, kind: output, shape index: {}]
  %s5 = sld [smem:[#allocation0]]
  $region42: #{tpu_custom_call.1} parent=0
    _
  %s7 = ssub.s32 1, %s5
  %s8 = scalar_select 0, %s7, %s5
  $region1: #{tpu_custom_call.1} parent=0
    #allocation2 [shape = 'u8[32768]{0}', space=vmem, size = 0x8000, scoped, tag = 'input window, operand 0, single buffered']
    #allocation3 [shape = 's32[1]{0}', space=sflag, size = 0x4, scoped, tag = 'scoped memory for tpu_custom_call.1']
    #allocation4 [shape = 's32[1]{0}', space=sflag, size = 0x4, scoped, tag = 'scoped memory for tpu_custom_call.1']
    #allocation5 [shape = 'u8[16384]{0}', space=vmem, size = 0x4000, scoped, tag = 'input window, operand 1, single buffered']
    #allocation6 [shape = 's32[1]{0}', space=sflag, size = 0x4, scoped, tag = 'scoped memory for tpu_custom_call.1']
    #allocation7 [shape = 'u8[4096]{0}', space=vmem, size = 0x1000, scoped, tag = 'input window, operand 2, single buffered']
    #allocation8 [shape = 'u8[4096]{0}', space=vmem, size = 0x1000, scoped, tag = 'input window, operand 3, single buffered']
    #allocation9 [shape = 's32[1]{0}', space=sflag, size = 0x4, scoped, tag = 'scoped memory for tpu_custom_call.1']
    #allocation10 [shape = 'u8[4096]{0}', space=vmem, size = 0x1000, scoped, tag = 'output window, operand 0, single buffered']
    %9 = vsyncpa [#allocation3], 0
    %10 = vsyncpa [#allocation6], 0
    %11 = vsyncpa [#allocation9], 0
    %12 = vsyncpa [#allocation4], 0
    // Predicated region
    $region2: #{tpu_custom_call.1} parent=1 // pred_check
      _
    $region3: #{tpu_custom_call.1} parent=1 // pred_check_branch
      %14 = sbr.rel (0) target = $region5
    $region4: #{tpu_custom_call.1} parent=1 // pred_region
      %16 = vsyncadd [#allocation3], 0
      %s17 = sshll.u32 %s0, 4
      %s18 = int_to_ptr.hbm [resolvable:$true] %s17
      %s19 = sshll.u32 [#allocation2], 4
      %s20 = int_to_ptr.vmem [resolvable:$true] %s19
      %25 = dma.hbm_to_vmem [thread:$0]  %s18, 1024, %s20, [#allocation3], 128, 128, 8
    $region5: #{tpu_custom_call.1} parent=1 // pred_fallthru
      _
    // Predicated region
    $region6: #{tpu_custom_call.1} parent=1 // pred_check
      _
    $region7: #{tpu_custom_call.1} parent=1 // pred_check_branch
      %27 = sbr.rel (0) target = $region9
    $region8: #{tpu_custom_call.1} parent=1 // pred_region
      %29 = vsyncadd [#allocation6], 0
      %s30 = sshll.u32 %s1, 4
      %s31 = int_to_ptr.hbm [resolvable:$true] %s30
      %s32 = sshll.u32 [#allocation5], 4
      %s33 = int_to_ptr.vmem [resolvable:$true] %s32
      %38 = dma.hbm_to_vmem [thread:$0]  %s31, 512, %s33, [#allocation6], 128, 128, 8
    $region9: #{tpu_custom_call.1} parent=1 // pred_fallthru
      _
    // Predicated region
    $region10: #{tpu_custom_call.1} parent=1 // pred_check
      _
    $region11: #{tpu_custom_call.1} parent=1 // pred_check_branch
      %40 = sbr.rel (0) target = $region13
    $region12: #{tpu_custom_call.1} parent=1 // pred_region
      %42 = vsyncadd [#allocation6], 0
      %s44 = sshll.u32 %s2, 4
      %s45 = int_to_ptr.hbm [resolvable:$true] %s44
      %s46 = sshll.u32 [#allocation7], 4
      %s47 = int_to_ptr.vmem [resolvable:$true] %s46
      %49 = dma.hbm_to_vmem [thread:$0]  %s45, 128, %s47, [#allocation6]
    $region13: #{tpu_custom_call.1} parent=1 // pred_fallthru
      _
    // Predicated region
    $region14: #{tpu_custom_call.1} parent=1 // pred_check
      _
    $region15: #{tpu_custom_call.1} parent=1 // pred_check_branch
      %51 = sbr.rel (0) target = $region17
    $region16: #{tpu_custom_call.1} parent=1 // pred_region
      %53 = vsyncadd [#allocation9], 0
      %s55 = sshll.u32 %s3, 4
      %s56 = int_to_ptr.hbm [resolvable:$true] %s55
      %s57 = sshll.u32 [#allocation8], 4
      %s58 = int_to_ptr.vmem [resolvable:$true] %s57
      %60 = dma.hbm_to_vmem [thread:$0]  %s56, 128, %s58, [#allocation9]
    $region17: #{tpu_custom_call.1} parent=1 // pred_fallthru
      _
    // Predicated region
    $region18: #{tpu_custom_call.1} parent=1 // pred_check
      _
    $region19: #{tpu_custom_call.1} parent=1 // pred_check_branch
      %62 = sbr.rel (0) target = $region21
    $region20: #{tpu_custom_call.1} parent=1 // pred_region
      %64 = dma.done [#allocation3], 1024
    $region21: #{tpu_custom_call.1} parent=1 // pred_fallthru
      _
    // Predicated region
    $region22: #{tpu_custom_call.1} parent=1 // pred_check
      _
    $region23: #{tpu_custom_call.1} parent=1 // pred_check_branch
      %66 = sbr.rel (0) target = $region25
    $region24: #{tpu_custom_call.1} parent=1 // pred_region
      %68 = dma.done [#allocation6], 512
    $region25: #{tpu_custom_call.1} parent=1 // pred_fallthru
      _
    // Predicated region
    $region26: #{tpu_custom_call.1} parent=1 // pred_check
      _
    $region27: #{tpu_custom_call.1} parent=1 // pred_check_branch
      %70 = sbr.rel (0) target = $region29
    $region28: #{tpu_custom_call.1} parent=1 // pred_region
      %72 = dma.done [#allocation6], 128
    $region29: #{tpu_custom_call.1} parent=1 // pred_fallthru
      _
    // Predicated region
    $region30: #{tpu_custom_call.1} parent=1 // pred_check
      _
    $region31: #{tpu_custom_call.1} parent=1 // pred_check_branch
      %74 = sbr.rel (0) target = $region33
    $region32: #{tpu_custom_call.1} parent=1 // pred_region
      %76 = dma.done [#allocation9], 128
    $region33: #{tpu_custom_call.1} parent=1 // pred_fallthru
      _
    %v77 = vld [vmem:[#allocation5] sm:$0xff]
    %v78 = vld [vmem:[#allocation5 + $0x8] sm:$0xff]
    %v79 = vld [vmem:[#allocation5 + $0x10] sm:$0xff]
    %v80 = vld [vmem:[#allocation5 + $0x18] sm:$0xff]
    %v81 = vld [vmem:[#allocation7] sm:$0xff]
    %v82 = vld [vmem:[#allocation8] sm:$0xff]
    %v83 = vld [vmem:[#allocation2] sm:$0xff]
    %vm84 = vcmask 261120
    %v86 = vsel %vm84, %v81, 0
    %88 = vmatpush.msra.mxu0 0.0
    %89 = vmatpush.msra.mxu0 0.0
    %90 = vmatpush.msra.mxu0 0.0
    %91 = vmatpush.msra.mxu0 0.0
    %92 = vmatpush.msra.mxu0 0.0
    %93 = vmatpush.msra.mxu0 0.0
    %94 = vmatpush.msra.mxu0 0.0
    %95 = vmatpush.msra.mxu0 0.0
    %96 = vmatpush.msra.mxu0 0.0
    %97 = vmatpush.msra.mxu0 0.0
    %98 = vmatpush.msra.mxu0 0.0
    %99 = vmatpush.msra.mxu0 0.0
    %100 = vmatpush.msra.mxu0 %v80
    %101 = vmatpush.msra.mxu0 %v79
    %102 = vmatpush.msra.mxu0 %v78
    %103 = vmatpush.msra.mxu0 %v77
    %104 = vmatmul.f32.gmra.mxu0 %v86
    %v105 = vpop.f32.mrf.mxu0
    %v106 = vadd.f32 0.0, %v105
    %107 = vdwg.mxu0
    %v108 = vadd.f32 %v83, %v106
    %v109 = vxor.u32 %v108, 2147483648
    %v110 = vmul.f32 %v109, 1.442695
    %v111 = vpow.pop %v110
    %v112 = vadd.f32 %v111, 1.0
    %v113 = vrcp.pop %v112
    %v114 = vmul.f32 %v112, %v113
    %v115 = vsub.f32 1.0, %v114
    %v116 = vmul.f32 %v113, %v115
    %v117 = vadd.f32 %v113, %v116
    %vm118 = vweird.f32 %v112
    %vm119 = vweird.f32 %v113
    %vm120 = vmor %vm118, %vm119
    %v121 = vsel %vm120, %v113, %v117
    %v122 = vand.u32 2147483647, %v112
    %vm123 = vcmp.eq.f32.partialorder %v122, 8.507059e+37
    %v124 = vand.u32 %v112, 2147483648
    %v125 = vor.u32 1.1754944e-38, %v124
    %v126 = vsel %vm123, %v125, %v121
    %v127 = vmul.f32 1.0, %v126
    %v128 = vtanh.pop %v108
    %130 = vrot.lane.b32.xlu0 %v82, 32
    %v131 = vpop.permute.xlu0 %130
    %v133 = vmul.f32 %v127, %v131
    %135 = vrot.lane.b32.xlu0 %v128, 32
    %v136 = vpop.permute.xlu0 %135
    %v138 = vmul.f32 %v127, %v136
    %140 = vrot.lane.b32.xlu0 %v138, 32
    %v141 = vpop.permute.xlu0 %140
    %v143 = vadd.f32 %v133, %v141
    %v144 = vtanh.pop %v143
    %146 = vrot.lane.b32.xlu0 %v144, 32
    %v147 = vpop.permute.xlu0 %146
    %v149 = vmul.f32 %v127, %v147
    %s150 = scalar_lea.vmem [#allocation2], 8
    %v151 = vld [vmem:[%s150] sm:$0xff]
    %153 = vrot.lane.b32.xlu0 %v149, 64
    %v154 = vpop.permute.xlu0 %153
    %v155 = vsel %vm84, %v154, 0
    %157 = vmatpush.msra.mxu0 0.0
    %158 = vmatpush.msra.mxu0 0.0
    %159 = vmatpush.msra.mxu0 0.0
    %160 = vmatpush.msra.mxu0 0.0
    %161 = vmatpush.msra.mxu0 0.0
    %162 = vmatpush.msra.mxu0 0.0
    %163 = vmatpush.msra.mxu0 0.0
    %164 = vmatpush.msra.mxu0 0.0
    %165 = vmatpush.msra.mxu0 0.0
    %166 = vmatpush.msra.mxu0 0.0
    %167 = vmatpush.msra.mxu0 0.0
    %168 = vmatpush.msra.mxu0 0.0
    %169 = vmatpush.msra.mxu0 %v80
    %170 = vmatpush.msra.mxu0 %v79
    %171 = vmatpush.msra.mxu0 %v78
    %172 = vmatpush.msra.mxu0 %v77
    %173 = vmatmul.f32.gmra.mxu0 %v155
    %v174 = vpop.f32.mrf.mxu0
    %v175 = vadd.f32 0.0, %v174
    %176 = vdwg.mxu0
    %v177 = vadd.f32 %v151, %v175
    %v178 = vxor.u32 %v177, 2147483648
    %v179 = vmul.f32 %v178, 1.442695
    %v180 = vpow.pop %v179
    %v181 = vadd.f32 %v180, 1.0
    %v182 = vrcp.pop %v181
    %v183 = vmul.f32 %v181, %v182
    %v184 = vsub.f32 1.0, %v183
    %v185 = vmul.f32 %v182, %v184
    %v186 = vadd.f32 %v182, %v185
    %vm187 = vweird.f32 %v181
    %vm188 = vweird.f32 %v182
    %vm189 = vmor %vm187, %vm188
    %v190 = vsel %vm189, %v182, %v186
    %v191 = vand.u32 2147483647, %v181
    %vm192 = vcmp.eq.f32.partialorder %v191, 8.507059e+37
    %v193 = vand.u32 %v181, 2147483648
    %v194 = vor.u32 1.1754944e-38, %v193
    %v195 = vsel %vm192, %v194, %v190
    %v196 = vmul.f32 1.0, %v195
    %v197 = vtanh.pop %v177
    %v198 = vmul.f32 %v196, %v143
    %200 = vrot.lane.b32.xlu0 %v197, 32
    %v201 = vpop.permute.xlu0 %200
    %v203 = vmul.f32 %v196, %v201
    %205 = vrot.lane.b32.xlu0 %v203, 32
    %v206 = vpop.permute.xlu0 %205
    %v208 = vadd.f32 %v198, %v206
    %v209 = vtanh.pop %v208
    %211 = vrot.lane.b32.xlu0 %v209, 32
    %v212 = vpop.permute.xlu0 %211
    %v214 = vmul.f32 %v196, %v212
    %s215 = scalar_lea.vmem [#allocation2], 16
    %v216 = vld [vmem:[%s215] sm:$0xff]
    %218 = vrot.lane.b32.xlu0 %v214, 64
    %v219 = vpop.permute.xlu0 %218
    %v220 = vsel %vm84, %v219, 0
    %222 = vmatpush.msra.mxu0 0.0
    %223 = vmatpush.msra.mxu0 0.0
    %224 = vmatpush.msra.mxu0 0.0
    %225 = vmatpush.msra.mxu0 0.0
    %226 = vmatpush.msra.mxu0 0.0
    %227 = vmatpush.msra.mxu0 0.0
    %228 = vmatpush.msra.mxu0 0.0
    %229 = vmatpush.msra.mxu0 0.0
    %230 = vmatpush.msra.mxu0 0.0
    %231 = vmatpush.msra.mxu0 0.0
    %232 = vmatpush.msra.mxu0 0.0
    %233 = vmatpush.msra.mxu0 0.0
    %234 = vmatpush.msra.mxu0 %v80
    %235 = vmatpush.msra.mxu0 %v79
    %236 = vmatpush.msra.mxu0 %v78
    %237 = vmatpush.msra.mxu0 %v77
    %238 = vmatmul.f32.gmra.mxu0 %v220
    %v239 = vpop.f32.mrf.mxu0
    %v240 = vadd.f32 0.0, %v239
    %241 = vdwg.mxu0
    %v242 = vadd.f32 %v216, %v240
    %v243 = vxor.u32 %v242, 2147483648
    %v244 = vmul.f32 %v243, 1.442695
    %v245 = vpow.pop %v244
    %v246 = vadd.f32 %v245, 1.0
    %v247 = vrcp.pop %v246
    %v248 = vmul.f32 %v246, %v247
    %v249 = vsub.f32 1.0, %v248
    %v250 = vmul.f32 %v247, %v249
    %v251 = vadd.f32 %v247, %v250
    %vm252 = vweird.f32 %v246
    %vm253 = vweird.f32 %v247
    %vm254 = vmor %vm252, %vm253
    %v255 = vsel %vm254, %v247, %v251
    %v256 = vand.u32 2147483647, %v246
    %vm257 = vcmp.eq.f32.partialorder %v256, 8.507059e+37
    %v258 = vand.u32 %v246, 2147483648
    %v259 = vor.u32 1.1754944e-38, %v258
    %v260 = vsel %vm257, %v259, %v255
    %v261 = vmul.f32 1.0, %v260
    %v262 = vtanh.pop %v242
    %v263 = vmul.f32 %v261, %v208
    %265 = vrot.lane.b32.xlu0 %v262, 32
    %v266 = vpop.permute.xlu0 %265
    %v268 = vmul.f32 %v261, %v266
    %270 = vrot.lane.b32.xlu0 %v268, 32
    %v271 = vpop.permute.xlu0 %270
    %v273 = vadd.f32 %v263, %v271
    %v274 = vtanh.pop %v273
    %276 = vrot.lane.b32.xlu0 %v274, 32
    %v277 = vpop.permute.xlu0 %276
    %v279 = vmul.f32 %v261, %v277
    %s280 = scalar_lea.vmem [#allocation2], 24
    %v281 = vld [vmem:[%s280] sm:$0xff]
    %283 = vrot.lane.b32.xlu0 %v279, 64
    %v284 = vpop.permute.xlu0 %283
    %v285 = vsel %vm84, %v284, 0
    %287 = vmatpush.msra.mxu0 0.0
    %288 = vmatpush.msra.mxu0 0.0
    %289 = vmatpush.msra.mxu0 0.0
    %290 = vmatpush.msra.mxu0 0.0
    %291 = vmatpush.msra.mxu0 0.0
    %292 = vmatpush.msra.mxu0 0.0
    %293 = vmatpush.msra.mxu0 0.0
    %294 = vmatpush.msra.mxu0 0.0
    %295 = vmatpush.msra.mxu0 0.0
    %296 = vmatpush.msra.mxu0 0.0
    %297 = vmatpush.msra.mxu0 0.0
    %298 = vmatpush.msra.mxu0 0.0
    %299 = vmatpush.msra.mxu0 %v80
    %300 = vmatpush.msra.mxu0 %v79
    %301 = vmatpush.msra.mxu0 %v78
    %302 = vmatpush.msra.mxu0 %v77
    %303 = vmatmul.f32.gmra.mxu0 %v285
    %v304 = vpop.f32.mrf.mxu0
    %v305 = vadd.f32 0.0, %v304
    %306 = vdwg.mxu0
    %v307 = vadd.f32 %v281, %v305
    %v308 = vxor.u32 %v307, 2147483648
    %v309 = vmul.f32 %v308, 1.442695
    %v310 = vpow.pop %v309
    %v311 = vadd.f32 %v310, 1.0
    %v312 = vrcp.pop %v311
    %v313 = vmul.f32 %v311, %v312
    %v314 = vsub.f32 1.0, %v313
    %v315 = vmul.f32 %v312, %v314
    %v316 = vadd.f32 %v312, %v315
    %vm317 = vweird.f32 %v311
    %vm318 = vweird.f32 %v312
    %vm319 = vmor %vm317, %vm318
    %v320 = vsel %vm319, %v312, %v316
    %v321 = vand.u32 2147483647, %v311
    %vm322 = vcmp.eq.f32.partialorder %v321, 8.507059e+37
    %v323 = vand.u32 %v311, 2147483648
    %v324 = vor.u32 1.1754944e-38, %v323
    %v325 = vsel %vm322, %v324, %v320
    %v326 = vmul.f32 1.0, %v325
    %v327 = vtanh.pop %v307
    %v328 = vmul.f32 %v326, %v273
    %330 = vrot.lane.b32.xlu0 %v327, 32
    %v331 = vpop.permute.xlu0 %330
    %v333 = vmul.f32 %v326, %v331
    %335 = vrot.lane.b32.xlu0 %v333, 32
    %v336 = vpop.permute.xlu0 %335
    %v338 = vadd.f32 %v328, %v336
    %v339 = vtanh.pop %v338
    %341 = vrot.lane.b32.xlu0 %v339, 32
    %v342 = vpop.permute.xlu0 %341
    %v344 = vmul.f32 %v326, %v342
    %s345 = scalar_lea.vmem [#allocation2], 32
    %v346 = vld [vmem:[%s345] sm:$0xff]
    %348 = vrot.lane.b32.xlu0 %v344, 64
    %v349 = vpop.permute.xlu0 %348
    %v350 = vsel %vm84, %v349, 0
    %352 = vmatpush.msra.mxu0 0.0
    %353 = vmatpush.msra.mxu0 0.0
    %354 = vmatpush.msra.mxu0 0.0
    %355 = vmatpush.msra.mxu0 0.0
    %356 = vmatpush.msra.mxu0 0.0
    %357 = vmatpush.msra.mxu0 0.0
    %358 = vmatpush.msra.mxu0 0.0
    %359 = vmatpush.msra.mxu0 0.0
    %360 = vmatpush.msra.mxu0 0.0
    %361 = vmatpush.msra.mxu0 0.0
    %362 = vmatpush.msra.mxu0 0.0
    %363 = vmatpush.msra.mxu0 0.0
    %364 = vmatpush.msra.mxu0 %v80
    %365 = vmatpush.msra.mxu0 %v79
    %366 = vmatpush.msra.mxu0 %v78
    %367 = vmatpush.msra.mxu0 %v77
    %368 = vmatmul.f32.gmra.mxu0 %v350
    %v369 = vpop.f32.mrf.mxu0
    %v370 = vadd.f32 0.0, %v369
    %371 = vdwg.mxu0
    %v372 = vadd.f32 %v346, %v370
    %v373 = vxor.u32 %v372, 2147483648
    %v374 = vmul.f32 %v373, 1.442695
    %v375 = vpow.pop %v374
    %v376 = vadd.f32 %v375, 1.0
    %v377 = vrcp.pop %v376
    %v378 = vmul.f32 %v376, %v377
    %v379 = vsub.f32 1.0, %v378
    %v380 = vmul.f32 %v377, %v379
    %v381 = vadd.f32 %v377, %v380
    %vm382 = vweird.f32 %v376
    %vm383 = vweird.f32 %v377
    %vm384 = vmor %vm382, %vm383
    %v385 = vsel %vm384, %v377, %v381
    %v386 = vand.u32 2147483647, %v376
    %vm387 = vcmp.eq.f32.partialorder %v386, 8.507059e+37
    %v388 = vand.u32 %v376, 2147483648
    %v389 = vor.u32 1.1754944e-38, %v388
    %v390 = vsel %vm387, %v389, %v385
    %v391 = vmul.f32 1.0, %v390
    %v392 = vtanh.pop %v372
    %v393 = vmul.f32 %v391, %v338
    %395 = vrot.lane.b32.xlu0 %v392, 32
    %v396 = vpop.permute.xlu0 %395
    %v398 = vmul.f32 %v391, %v396
    %400 = vrot.lane.b32.xlu0 %v398, 32
    %v401 = vpop.permute.xlu0 %400
    %v403 = vadd.f32 %v393, %v401
    %v404 = vtanh.pop %v403
    %406 = vrot.lane.b32.xlu0 %v404, 32
    %v407 = vpop.permute.xlu0 %406
    %v409 = vmul.f32 %v391, %v407
    %s410 = scalar_lea.vmem [#allocation2], 40
    %v411 = vld [vmem:[%s410] sm:$0xff]
    %413 = vrot.lane.b32.xlu0 %v409, 64
    %v414 = vpop.permute.xlu0 %413
    %v415 = vsel %vm84, %v414, 0
    %417 = vmatpush.msra.mxu0 0.0
    %418 = vmatpush.msra.mxu0 0.0
    %419 = vmatpush.msra.mxu0 0.0
    %420 = vmatpush.msra.mxu0 0.0
    %421 = vmatpush.msra.mxu0 0.0
    %422 = vmatpush.msra.mxu0 0.0
    %423 = vmatpush.msra.mxu0 0.0
    %424 = vmatpush.msra.mxu0 0.0
    %425 = vmatpush.msra.mxu0 0.0
    %426 = vmatpush.msra.mxu0 0.0
    %427 = vmatpush.msra.mxu0 0.0
    %428 = vmatpush.msra.mxu0 0.0
    %429 = vmatpush.msra.mxu0 %v80
    %430 = vmatpush.msra.mxu0 %v79
    %431 = vmatpush.msra.mxu0 %v78
    %432 = vmatpush.msra.mxu0 %v77
    %433 = vmatmul.f32.gmra.mxu0 %v415
    %v434 = vpop.f32.mrf.mxu0
    %v435 = vadd.f32 0.0, %v434
    %436 = vdwg.mxu0
    %v437 = vadd.f32 %v411, %v435
    %v438 = vxor.u32 %v437, 2147483648
    %v439 = vmul.f32 %v438, 1.442695
    %v440 = vpow.pop %v439
    %v441 = vadd.f32 %v440, 1.0
    %v442 = vrcp.pop %v441
    %v443 = vmul.f32 %v441, %v442
    %v444 = vsub.f32 1.0, %v443
    %v445 = vmul.f32 %v442, %v444
    %v446 = vadd.f32 %v442, %v445
    %vm447 = vweird.f32 %v441
    %vm448 = vweird.f32 %v442
    %vm449 = vmor %vm447, %vm448
    %v450 = vsel %vm449, %v442, %v446
    %v451 = vand.u32 2147483647, %v441
    %vm452 = vcmp.eq.f32.partialorder %v451, 8.507059e+37
    %v453 = vand.u32 %v441, 2147483648
    %v454 = vor.u32 1.1754944e-38, %v453
    %v455 = vsel %vm452, %v454, %v450
    %v456 = vmul.f32 1.0, %v455
    %v457 = vtanh.pop %v437
    %v458 = vmul.f32 %v456, %v403
    %460 = vrot.lane.b32.xlu0 %v457, 32
    %v461 = vpop.permute.xlu0 %460
    %v463 = vmul.f32 %v456, %v461
    %465 = vrot.lane.b32.xlu0 %v463, 32
    %v466 = vpop.permute.xlu0 %465
    %v468 = vadd.f32 %v458, %v466
    %v469 = vtanh.pop %v468
    %471 = vrot.lane.b32.xlu0 %v469, 32
    %v472 = vpop.permute.xlu0 %471
    %v474 = vmul.f32 %v456, %v472
    %s475 = scalar_lea.vmem [#allocation2], 48
    %v476 = vld [vmem:[%s475] sm:$0xff]
    %478 = vrot.lane.b32.xlu0 %v474, 64
    %v479 = vpop.permute.xlu0 %478
    %v480 = vsel %vm84, %v479, 0
    %482 = vmatpush.msra.mxu0 0.0
    %483 = vmatpush.msra.mxu0 0.0
    %484 = vmatpush.msra.mxu0 0.0
    %485 = vmatpush.msra.mxu0 0.0
    %486 = vmatpush.msra.mxu0 0.0
    %487 = vmatpush.msra.mxu0 0.0
    %488 = vmatpush.msra.mxu0 0.0
    %489 = vmatpush.msra.mxu0 0.0
    %490 = vmatpush.msra.mxu0 0.0
    %491 = vmatpush.msra.mxu0 0.0
    %492 = vmatpush.msra.mxu0 0.0
    %493 = vmatpush.msra.mxu0 0.0
    %494 = vmatpush.msra.mxu0 %v80
    %495 = vmatpush.msra.mxu0 %v79
    %496 = vmatpush.msra.mxu0 %v78
    %497 = vmatpush.msra.mxu0 %v77
    %498 = vmatmul.f32.gmra.mxu0 %v480
    %v499 = vpop.f32.mrf.mxu0
    %v500 = vadd.f32 0.0, %v499
    %501 = vdwg.mxu0
    %v502 = vadd.f32 %v476, %v500
    %v503 = vxor.u32 %v502, 2147483648
    %v504 = vmul.f32 %v503, 1.442695
    %v505 = vpow.pop %v504
    %v506 = vadd.f32 %v505, 1.0
    %v507 = vrcp.pop %v506
    %v508 = vmul.f32 %v506, %v507
    %v509 = vsub.f32 1.0, %v508
    %v510 = vmul.f32 %v507, %v509
    %v511 = vadd.f32 %v507, %v510
    %vm512 = vweird.f32 %v506
    %vm513 = vweird.f32 %v507
    %vm514 = vmor %vm512, %vm513
    %v515 = vsel %vm514, %v507, %v511
    %v516 = vand.u32 2147483647, %v506
    %vm517 = vcmp.eq.f32.partialorder %v516, 8.507059e+37
    %v518 = vand.u32 %v506, 2147483648
    %v519 = vor.u32 1.1754944e-38, %v518
    %v520 = vsel %vm517, %v519, %v515
    %v521 = vmul.f32 1.0, %v520
    %v522 = vtanh.pop %v502
    %v523 = vmul.f32 %v521, %v468
    %525 = vrot.lane.b32.xlu0 %v522, 32
    %v526 = vpop.permute.xlu0 %525
    %v528 = vmul.f32 %v521, %v526
    %530 = vrot.lane.b32.xlu0 %v528, 32
    %v531 = vpop.permute.xlu0 %530
    %v533 = vadd.f32 %v523, %v531
    %v534 = vtanh.pop %v533
    %536 = vrot.lane.b32.xlu0 %v534, 32
    %v537 = vpop.permute.xlu0 %536
    %v539 = vmul.f32 %v521, %v537
    %s540 = scalar_lea.vmem [#allocation2], 56
    %v541 = vld [vmem:[%s540] sm:$0xff]
    %543 = vrot.lane.b32.xlu0 %v539, 64
    %v544 = vpop.permute.xlu0 %543
    %v545 = vsel %vm84, %v544, 0
    %547 = vmatpush.msra.mxu0 0.0
    %548 = vmatpush.msra.mxu0 0.0
    %549 = vmatpush.msra.mxu0 0.0
    %550 = vmatpush.msra.mxu0 0.0
    %551 = vmatpush.msra.mxu0 0.0
    %552 = vmatpush.msra.mxu0 0.0
    %553 = vmatpush.msra.mxu0 0.0
    %554 = vmatpush.msra.mxu0 0.0
    %555 = vmatpush.msra.mxu0 0.0
    %556 = vmatpush.msra.mxu0 0.0
    %557 = vmatpush.msra.mxu0 0.0
    %558 = vmatpush.msra.mxu0 0.0
    %559 = vmatpush.msra.mxu0 %v80
    %560 = vmatpush.msra.mxu0 %v79
    %561 = vmatpush.msra.mxu0 %v78
    %562 = vmatpush.msra.mxu0 %v77
    %563 = vmatmul.f32.gmra.mxu0 %v545
    %v564 = vpop.f32.mrf.mxu0
    %v565 = vadd.f32 0.0, %v564
    %566 = vdwg.mxu0
    %v567 = vadd.f32 %v541, %v565
    %v568 = vxor.u32 %v567, 2147483648
    %v569 = vmul.f32 %v568, 1.442695
    %v570 = vpow.pop %v569
    %v571 = vadd.f32 %v570, 1.0
    %v572 = vrcp.pop %v571
    %v573 = vmul.f32 %v571, %v572
    %v574 = vsub.f32 1.0, %v573
    %v575 = vmul.f32 %v572, %v574
    %v576 = vadd.f32 %v572, %v575
    %vm577 = vweird.f32 %v571
    %vm578 = vweird.f32 %v572
    %vm579 = vmor %vm577, %vm578
    %v580 = vsel %vm579, %v572, %v576
    %v581 = vand.u32 2147483647, %v571
    %vm582 = vcmp.eq.f32.partialorder %v581, 8.507059e+37
    %v583 = vand.u32 %v571, 2147483648
    %v584 = vor.u32 1.1754944e-38, %v583
    %v585 = vsel %vm582, %v584, %v580
    %v586 = vmul.f32 1.0, %v585
    %v587 = vtanh.pop %v567
    %v588 = vmul.f32 %v586, %v533
    %590 = vrot.lane.b32.xlu0 %v587, 32
    %v591 = vpop.permute.xlu0 %590
    %v593 = vmul.f32 %v586, %v591
    %595 = vrot.lane.b32.xlu0 %v593, 32
    %v596 = vpop.permute.xlu0 %595
    %v598 = vadd.f32 %v588, %v596
    %v599 = vtanh.pop %v598
    %601 = vrot.lane.b32.xlu0 %v599, 32
    %v602 = vpop.permute.xlu0 %601
    %v604 = vmul.f32 %v586, %v602
    %606 = vrot.lane.b32.xlu0 %v604, 64
    %v607 = vpop.permute.xlu0 %606
    %609 = vst.msk [vmem:[#allocation10] sm:$0xff] %vm84, %v607
    // Predicated region
    $region34: #{tpu_custom_call.1} parent=1 // pred_check
      _
    $region35: #{tpu_custom_call.1} parent=1 // pred_check_branch
      %611 = sbr.rel (0) target = $region37
    $region36: #{tpu_custom_call.1} parent=1 // pred_region
      %613 = vsyncadd [#allocation4], 0
      %s615 = sshll.u32 [#allocation10], 4
      %s616 = int_to_ptr.vmem [resolvable:$true] %s615
      %s617 = sshll.u32 %s4, 4
      %s618 = int_to_ptr.hbm [resolvable:$true] %s617
      %620 = dma.vmem_to_hbm [thread:$0]  %s616, 128, %s618, [#allocation4]
    $region37: #{tpu_custom_call.1} parent=1 // pred_fallthru
      _
    // Predicated region
    $region38: #{tpu_custom_call.1} parent=1 // pred_check
      _
    $region39: #{tpu_custom_call.1} parent=1 // pred_check_branch
      %622 = sbr.rel (0) target = $region41
    $region40: #{tpu_custom_call.1} parent=1 // pred_region
      %624 = dma.done [#allocation4], 128
    $region41: #{tpu_custom_call.1} parent=1 // pred_fallthru
      _
    %625 = vsyncpa [#allocation3], 1
    %626 = vsyncpa [#allocation6], 1
    %627 = vsyncpa [#allocation9], 1
    %628 = vsyncpa [#allocation4], 1

</llo_original>
